<compile_context>
chip_gen: v6e
topology: v6e:2x2x1
jax: 0.10.0
libtpu: 0.0.40
codegen_flags: <defaults>
</compile_context>

<pallas_src>
import functools

import jax
import jax.numpy as jnp
from jax.experimental import pallas as pl
from jax.experimental.pallas import tpu as pltpu


def _round_up(x, m):
    return (x + m - 1) // m * m


def _pad_to(a, shape):
    """Zero-pad 2-D array `a` up to `shape`; no-op if already that shape."""
    if tuple(a.shape) == tuple(shape):
        return a
    return jnp.pad(a, [(0, t - s) for s, t in zip(a.shape, shape)])


def _vmem_capacity_bytes():
    """Per-core VMEM capacity; conservative 64 MiB fallback (v7x size)."""
    try:
        info = pltpu.get_tpu_info()
        cap = int(getattr(info, "vmem_capacity_bytes"))
        if cap > 0:
            return cap
    except Exception:
        pass
    return 64 * 1024 * 1024


def _gemm_bias_kernel(x_ref, w_ref, b_ref, o_ref, *, tile_n, activation):
    """One N-tile of:  out = act(x @ W + b).

    x is resident across the whole grid, W / out are streamed over the output
    dimension, and b is fully resident (sliced in-kernel, lane-aligned).
    """
    j = pl.program_id(0)
    start = pl.multiple_of(j * tile_n, 128)
    b_tile = b_ref[:, pl.ds(start, tile_n)].astype(jnp.float32)
    y = jnp.dot(x_ref[...], w_ref[...],
                preferred_element_type=jnp.float32) + b_tile
    if activation is not None:
        y = activation(y)
    o_ref[...] = y.astype(o_ref.dtype)


def _streamed_gemm_bias(x, w, b, *, activation=None, tile_n=2048,
                        out_dtype=jnp.float32):
    """[M, D] @ [D, N] + [1, N] (optionally followed by `activation`).

    D and N must be pre-padded to multiples of 128.  M is padded internally
    (16-row alignment for sub-32-bit x) and sliced off on return, as is any
    N padding introduced to make N a multiple of the chosen tile.
    """
    M, D = x.shape
    Dw, N = w.shape
    assert D == Dw, (D, Dw)
    b = b.reshape(1, N)
    assert D % 128 == 0 and N % 128 == 0, (
        "feature dims must be pre-padded to multiples of 128")

    sub = 16 if jnp.dtype(x.dtype).itemsize < 4 else 8
    M_pad = _round_up(M, sub)
    xp = _pad_to(x, (M_pad, D))

    x_b = jnp.dtype(xp.dtype).itemsize
    w_b = jnp.dtype(w.dtype).itemsize
    b_b = jnp.dtype(b.dtype).itemsize
    o_b = jnp.dtype(out_dtype).itemsize

    capacity = _vmem_capacity_bytes()
    budget = (capacity * 3) // 4           # ~48 MiB on v7x, ~96 MiB on v5e/v6e

    def _n_buffers(tn):
        return 3 if pl.cdiv(N, tn) >= 3 else 2

    def _vmem_need(tn):
        n_pad = _round_up(N, tn)
        # Resident inputs (x, b) still get 2 buffers by default.
        resident = 2 * (M_pad * D * x_b + n_pad * b_b)
        streamed = (_n_buffers(tn) * D * tn * w_b      # W stream
                    + 2 * M_pad * tn * o_b)            # output stream
        return resident + streamed

    tn = min(_round_up(tile_n, 128), N)
    while tn > 128 and _vmem_need(tn) > budget:
        tn = max(128, (tn // 2) // 128 * 128)

    nt = pl.cdiv(N, tn)
    n_pad = nt * tn
    wp = _pad_to(w, (D, n_pad))
    bp = _pad_to(b, (1, n_pad))

    need = _vmem_need(tn)
    vmem_limit = int(min(capacity - 8 * 1024 * 1024,
                         max(2 * need, 32 * 1024 * 1024)))

    # Streamed weight spec; triple-buffer only when there are enough tiles.
    if nt >= 3:
        try:
            w_spec = pl.BlockSpec((D, tn), lambda j: (0, j),
                                  pipeline_mode=pl.Buffered(3))
        except TypeError:
            w_spec = pl.BlockSpec((D, tn), lambda j: (0, j))
    else:
        w_spec = pl.BlockSpec((D, tn), lambda j: (0, j))

    flops = 2 * M_pad * D * n_pad
    transcendentals = M_pad * n_pad if activation is not None else 0
    bytes_accessed = (M_pad * D * x_b + D * n_pad * w_b + n_pad * b_b
                      + M_pad * n_pad * o_b)

    kernel = functools.partial(_gemm_bias_kernel, tile_n=tn,
                               activation=activation)

    out = pl.pallas_call(
        kernel,
        out_shape=jax.ShapeDtypeStruct((M_pad, n_pad), out_dtype),
        grid_spec=pltpu.PrefetchScalarGridSpec(
            num_scalar_prefetch=0,
            grid=(nt,),
            in_specs=[
                pl.BlockSpec((M_pad, D), lambda j: (0, 0)),   # x (resident)
                w_spec,                                       # W (streamed)
                pl.BlockSpec((1, n_pad), lambda j: (0, 0)),   # b (resident)
            ],
            out_specs=pl.BlockSpec((M_pad, tn), lambda j: (0, j)),
        ),
        compiler_params=pltpu.CompilerParams(
            # No cross-step carried state -> safe to shard N tiles across
            # both TensorCores on v7x; no effect on single-TC v5e/v6e.
            dimension_semantics=("parallel",),
            vmem_limit_bytes=vmem_limit,
        ),
        cost_estimate=pl.CostEstimate(
            flops=flops,
            transcendentals=transcendentals,
            bytes_accessed=bytes_accessed,
        ),
    )(xp, wp, bp)
    return out[:M, :N]


def prefix_mlp(x, w1, b1, w2, b2, *, tile_n=2048, out_dtype=jnp.float32):
    """[M, D] -> [M, O] via Linear -> Tanh -> Linear (two streamed GEMMs)."""
    # First (tiny) GEMM hoisted into its own call: keeps W1 out of the big
    # W2 stream's VMEM working set and removes any grid-carried scratch.
    h = _streamed_gemm_bias(x, w1, b1, activation=jnp.tanh,
                            tile_n=tile_n, out_dtype=w2.dtype)
    # TODO(synk): h is rounded to the bf16 param dtype between the two GEMMs
    # to keep a pure-bf16 MXU path; the f32 PyTorch reference keeps f32
    # activations throughout (difference is ~2^-9 relative on tanh outputs).
    return _streamed_gemm_bias(h, w2, b2, activation=None,
                               tile_n=tile_n, out_dtype=out_dtype)


class PrefixEncoderPallas:
    """JAX/Pallas equivalent of peft's PrefixEncoder (prefix_projection=True)."""

    def __init__(self, *, num_virtual_tokens, token_dim, num_layers,
                 encoder_hidden_size, prefix_projection=True, key=None,
                 param_dtype=jnp.bfloat16):
        self.prefix_projection = prefix_projection
        self.token_dim = token_dim
        self.num_layers = num_layers
        self.encoder_hidden_size = encoder_hidden_size
        self.num_virtual_tokens = num_virtual_tokens
        self.out_dim = num_layers * 2 * token_dim
        if key is None:
            key = jax.random.PRNGKey(0)
        k0, k1, k2, k3, k4 = jax.random.split(key, 5)
        if prefix_projection:
            d_pad = _round_up(token_dim, 128)
            h_pad = _round_up(encoder_hidden_size, 128)
            o_pad = _round_up(self.out_dim, 128)
            emb = jax.random.normal(k0, (num_virtual_tokens, token_dim),
                                    jnp.float32) * 0.02
            w1 = jax.random.normal(k1, (token_dim, encoder_hidden_size),
                                   jnp.float32) * 0.02
            b1 = jax.random.normal(k2, (1, encoder_hidden_size),
                                   jnp.float32) * 0.02
            w2 = jax.random.normal(k3, (encoder_hidden_size, self.out_dim),
                                   jnp.float32) * 0.02
            b2 = jax.random.normal(k4, (1, self.out_dim), jnp.float32) * 0.02
            # Pad feature dims to multiples of 128 once (lane aligned) and
            # store in bf16: halves the HBM stream for the large W2.
            self.embedding = _pad_to(emb, (num_virtual_tokens, d_pad)).astype(param_dtype)
            self.w1 = _pad_to(w1, (d_pad, h_pad)).astype(param_dtype)
            self.b1 = _pad_to(b1, (1, h_pad)).astype(param_dtype)
            self.w2 = _pad_to(w2, (h_pad, o_pad)).astype(param_dtype)
            self.b2 = _pad_to(b2, (1, o_pad)).astype(param_dtype)
        else:
            self.embedding = (jax.random.normal(
                k0, (num_virtual_tokens, self.out_dim), jnp.float32) * 0.02
            ).astype(param_dtype)

    def __call__(self, prefix):
        # prefix: (batch, num_virtual_tokens) int32 token ids
        B, T = prefix.shape
        if self.prefix_projection:
            # Embedding gather (data-dependent row indexing) is left to XLA.
            x = jnp.take(self.embedding, prefix, axis=0).reshape(B * T, -1)
            y = prefix_mlp(x, self.w1, self.b1, self.w2, self.b2,
                           out_dtype=jnp.float32)
            return y[:, :self.out_dim].reshape(B, T, self.out_dim)
        # No-projection path is a pure gather; no Pallas hot path.
        return jnp.take(self.embedding, prefix, axis=0)


if __name__ == "__main__":
    # Small shapes consistent with the module's forward.
    batch = 2
    num_virtual_tokens = 8
    token_dim = 32
    encoder_hidden_size = 32
    num_layers = 2
    out_dim = num_layers * 2 * token_dim

    enc = PrefixEncoderPallas(
        num_virtual_tokens=num_virtual_tokens,
        token_dim=token_dim,
        num_layers=num_layers,
        encoder_hidden_size=encoder_hidden_size,
        prefix_projection=True,
        key=jax.random.PRNGKey(0),
    )

    prefix = jnp.tile(jnp.arange(num_virtual_tokens, dtype=jnp.int32)[None, :],
                      (batch, 1))

    out = jax.block_until_ready(enc(prefix))

    # Reference in plain JAX, mirroring the kernel's bf16 params / bf16 h
    # hand-off with f32 accumulation.
    f32 = jnp.float32
    x_ref = jnp.take(enc.embedding, prefix, axis=0).reshape(
        batch * num_virtual_tokens, -1).astype(f32)
    h_ref = jnp.tanh(
        jnp.dot(x_ref, enc.w1.astype(f32), precision=jax.lax.Precision.HIGHEST)
        + enc.b1.astype(f32))
    h_ref = h_ref.astype(jnp.bfloat16).astype(f32)
    ref = (jnp.dot(h_ref, enc.w2.astype(f32),
                   precision=jax.lax.Precision.HIGHEST)
           + enc.b2.astype(f32))
    ref = ref[:, :out_dim].reshape(batch, num_virtual_tokens, out_dim)

    assert out.shape == (batch, num_virtual_tokens, out_dim)
    assert jnp.allclose(out, ref, atol=1e-3, rtol=1e-2), \
        float(jnp.max(jnp.abs(out - ref)))

    print("KERNEL_OK")
</pallas_src>

<mosaic_0001>
module attributes {stable_mosaic.version = 11 : i64} {
  func.func @_gemm_bias_kernel(%arg0: i32, %arg1: memref<16x128xbf16, #tpu.memory_space<vmem>>, %arg2: memref<128x128xbf16, #tpu.memory_space<vmem>>, %arg3: memref<1x128xbf16, #tpu.memory_space<vmem>>, %arg4: memref<16x128xbf16, #tpu.memory_space<vmem>>) attributes {dimension_semantics = [#tpu.dimension_semantics<parallel>], iteration_bounds = array<i64: 1>, scalar_prefetch = 0 : i64, scratch_operands = 0 : i64, tpu.core_type = #tpu.core_type<tc>, window_params = [{pipeline_mode = #tpu.pipeline_mode<synchronous>, transform_indices = @transform_0, window_bounds = array<i64: 16, 128>}, {transform_indices = @transform_1, window_bounds = array<i64: 128, 128>}, {pipeline_mode = #tpu.pipeline_mode<synchronous>, transform_indices = @transform_2, window_bounds = array<i64: 1, 128>}, {transform_indices = @transform_3, window_bounds = array<i64: 16, 128>}]} {
    %c128_i32 = arith.constant 128 : i32
    %0 = arith.muli %arg0, %c128_i32 : i32
    %1 = tpu.assume_multiple %0, 128 : i32
    %c0 = arith.constant 0 : index
    %2 = arith.index_cast %1 : i32 to index
    %3 = vector.load %arg3[%c0, %2] : memref<1x128xbf16, #tpu.memory_space<vmem>>, vector<1x128xbf16>
    %4 = arith.extf %3 : vector<1x128xbf16> to vector<1x128xf32>
    %c0_0 = arith.constant 0 : index
    %c0_1 = arith.constant 0 : index
    %5 = vector.load %arg1[%c0_0, %c0_1] : memref<16x128xbf16, #tpu.memory_space<vmem>>, vector<16x128xbf16>
    %c0_2 = arith.constant 0 : index
    %c0_3 = arith.constant 0 : index
    %6 = vector.load %arg2[%c0_2, %c0_3] : memref<128x128xbf16, #tpu.memory_space<vmem>>, vector<128x128xbf16>
    %cst = arith.constant dense<0.000000e+00> : vector<16x128xf32>
    %7 = tpu.matmul %5, %6, %cst {dimension_numbers = #tpu.dot_dimension_numbers<[1], [0], [0], [1], [0, 0, 1, 1], [], []>} : vector<16x128xbf16>, vector<128x128xbf16>, vector<16x128xf32> -> vector<16x128xf32>
    %8 = vector.broadcast %4 : vector<1x128xf32> to vector<16x128xf32>
    %9 = arith.addf %7, %8 : vector<16x128xf32>
    %10 = math.tanh %9 : vector<16x128xf32>
    %11 = arith.truncf %10 : vector<16x128xf32> to vector<16x128xbf16>
    %c0_4 = arith.constant 0 : index
    %c0_5 = arith.constant 0 : index
    %12 = vector.load %arg4[%c0_4, %c0_5] : memref<16x128xbf16, #tpu.memory_space<vmem>>, vector<16x128xbf16>
    tpu.vector_store %arg4[%c0_4, %c0_5], %11 {strides = array<i32>} : memref<16x128xbf16, #tpu.memory_space<vmem>>, vector<16x128xbf16>,
    return
  }
  func.func @transform_0(%arg0: i32) -> (i32, i32) {
    %c0_i32 = arith.constant 0 : i32
    %c0_i32_0 = arith.constant 0 : i32
    %c0_i32_1 = arith.constant 0 : i32
    return %c0_i32, %c0_i32_0 : i32, i32
  }
  func.func @transform_1(%arg0: i32) -> (i32, i32) {
    %c0_i32 = arith.constant 0 : i32
    %c0_i32_0 = arith.constant 0 : i32
    return %c0_i32, %arg0 : i32, i32
  }
  func.func @transform_2(%arg0: i32) -> (i32, i32) {
    %c0_i32 = arith.constant 0 : i32
    %c0_i32_0 = arith.constant 0 : i32
    %c0_i32_1 = arith.constant 0 : i32
    return %c0_i32, %c0_i32_0 : i32, i32
  }
  func.func @transform_3(%arg0: i32) -> (i32, i32) {
    %c0_i32 = arith.constant 0 : i32
    %c0_i32_0 = arith.constant 0 : i32
    return %c0_i32, %arg0 : i32, i32
  }
}

</mosaic_0001>

<llo_original>
// kernel: tpu_custom_call.1
$region0: #{tpu_custom_call.1}
  #allocation0 [shape = 'u32[]', space=smem, size = 0x4, offset = 0x4, fixed_abs, tag = 'smem constant byte address 0x4 - core index']
  #allocation1 [shape = 'u32[144,128]{1,0:T(1,128)}', space=vmem, size = 0x12000, scoped, tag = 'internal scratch']
  %s0 = inlined_call_operand.hbm [shape: bf16[16,128], index: 0, kind: input, shape index: {}]
  %s1 = inlined_call_operand.hbm [shape: bf16[128,128], index: 1, kind: input, shape index: {}]
  %s2 = inlined_call_operand.vmem [shape: bf16[1,128], index: 2, kind: input, shape index: {}]
  %s3 = inlined_call_operand.hbm [shape: bf16[16,128], index: 3, kind: output, shape index: {}]
  %s4 = sld [smem:[#allocation0]]
  $region30: #{tpu_custom_call.1} parent=0
    _
  %s6 = ssub.s32 1, %s4
  %s7 = scalar_select 0, %s6, %s4
  $region1: #{tpu_custom_call.1} parent=0
    #allocation2 [shape = 'u8[4096]{0}', space=vmem, size = 0x1000, scoped, tag = 'input window, operand 0, single buffered']
    #allocation3 [shape = 's32[1]{0}', space=sflag, size = 0x4, scoped, tag = 'scoped memory for tpu_custom_call.1']
    #allocation4 [shape = 's32[1]{0}', space=sflag, size = 0x4, scoped, tag = 'scoped memory for tpu_custom_call.1']
    #allocation5 [shape = 'u8[32768]{0}', space=vmem, size = 0x8000, scoped, tag = 'input window, operand 1, single buffered']
    #allocation6 [shape = 's32[1]{0}', space=sflag, size = 0x4, scoped, tag = 'scoped memory for tpu_custom_call.1']
    #allocation7 [shape = 'u8[4096]{0}', space=vmem, size = 0x1000, scoped, tag = 'output window, operand 0, single buffered']
    %8 = vsyncpa [#allocation3], 0
    %9 = vsyncpa [#allocation6], 0
    %10 = vsyncpa [#allocation4], 0
    // Predicated region
    $region2: #{tpu_custom_call.1} parent=1 // pred_check
      _
    $region3: #{tpu_custom_call.1} parent=1 // pred_check_branch
      %12 = sbr.rel (0) target = $region5
    $region4: #{tpu_custom_call.1} parent=1 // pred_region
      %s14 = ssub.s32 128, 128
      %15 = vsyncadd [#allocation3], %s14
      %s16 = sshll.u32 [#allocation2], 4
      %s17 = int_to_ptr.vmem [resolvable:$true] %s16
      %22 = dma.hbm_to_vmem [thread:$0]  %s0, 128, %s17, [#allocation3], 64, 64, 4
    $region5: #{tpu_custom_call.1} parent=1 // pred_fallthru
      _
    // Predicated region
    $region6: #{tpu_custom_call.1} parent=1 // pred_check
      _
    $region7: #{tpu_custom_call.1} parent=1 // pred_check_branch
      %24 = sbr.rel (0) target = $region9
    $region8: #{tpu_custom_call.1} parent=1 // pred_region
      %s26 = ssub.s32 1024, 1024
      %27 = vsyncadd [#allocation6], %s26
      %s28 = sshll.u32 [#allocation5], 4
      %s29 = int_to_ptr.vmem [resolvable:$true] %s28
      %34 = dma.hbm_to_vmem [thread:$0]  %s1, 1024, %s29, [#allocation6], 64, 64, 4
    $region9: #{tpu_custom_call.1} parent=1 // pred_fallthru
      _
    // Predicated region
    $region10: #{tpu_custom_call.1} parent=1 // pred_check
      _
    $region11: #{tpu_custom_call.1} parent=1 // pred_check_branch
      %36 = sbr.rel (0) target = $region13
    $region12: #{tpu_custom_call.1} parent=1 // pred_region
      _
    $region13: #{tpu_custom_call.1} parent=1 // pred_fallthru
      _
    // Predicated region
    $region14: #{tpu_custom_call.1} parent=1 // pred_check
      _
    $region15: #{tpu_custom_call.1} parent=1 // pred_check_branch
      %38 = sbr.rel (0) target = $region17
    $region16: #{tpu_custom_call.1} parent=1 // pred_region
      %39 = dma.done [#allocation3], 128
    $region17: #{tpu_custom_call.1} parent=1 // pred_fallthru
      _
    // Predicated region
    $region18: #{tpu_custom_call.1} parent=1 // pred_check
      _
    $region19: #{tpu_custom_call.1} parent=1 // pred_check_branch
      %41 = sbr.rel (0) target = $region21
    $region20: #{tpu_custom_call.1} parent=1 // pred_region
      %42 = dma.done [#allocation6], 1024
    $region21: #{tpu_custom_call.1} parent=1 // pred_fallthru
      _
    %s44 = smul.u32 0, 128
    %s45 = sshra.s32 %s44, 7
    %s46 = sand.u32 %s44, 127
    %s47 = scalar_lea.vmem %s2, %s45
    %v48 = vld [vmem:[%s47] sm:$0x1]
    %v49 = vunpack.c.l.bf16 %v48
    %v50 = vld [vmem:[#allocation2] sm:$0xf]
    %v51 = vld [vmem:[#allocation2 + $0x4] sm:$0xf]
    %v52 = vld [vmem:[#allocation5] sm:$0xf]
    %v53 = vld [vmem:[#allocation5 + $0x4] sm:$0xf]
    %v54 = vld [vmem:[#allocation5 + $0x8] sm:$0xf]
    %v55 = vld [vmem:[#allocation5 + $0xc] sm:$0xf]
    %v56 = vld [vmem:[#allocation5 + $0x10] sm:$0xf]
    %v57 = vld [vmem:[#allocation5 + $0x14] sm:$0xf]
    %v58 = vld [vmem:[#allocation5 + $0x18] sm:$0xf]
    %v59 = vld [vmem:[#allocation5 + $0x1c] sm:$0xf]
    %v60 = vld [vmem:[#allocation5 + $0x20] sm:$0xf]
    %v61 = vld [vmem:[#allocation5 + $0x24] sm:$0xf]
    %v62 = vld [vmem:[#allocation5 + $0x28] sm:$0xf]
    %v63 = vld [vmem:[#allocation5 + $0x2c] sm:$0xf]
    %v64 = vld [vmem:[#allocation5 + $0x30] sm:$0xf]
    %v65 = vld [vmem:[#allocation5 + $0x34] sm:$0xf]
    %v66 = vld [vmem:[#allocation5 + $0x38] sm:$0xf]
    %v67 = vld [vmem:[#allocation5 + $0x3c] sm:$0xf]
    %v68 = vlaneseq
    %v69 = vshrl.u32 %v68, 7
    %v70 = vsub.s32 0, %v69
    %v71 = vrot.slane %v49, %v70
    %v74 = vunpack.c.l.b16 %v50
    %v75 = vunpack.c.l.b16 %v51
    %v76 = vpack.c.b16 %v75, %v74
    %v94 = vunpack.c.l.b16 %v52
    %v95 = vunpack.c.l.b16 %v53
    %v96 = vunpack.c.l.b16 %v54
    %v97 = vunpack.c.l.b16 %v55
    %v98 = vunpack.c.l.b16 %v56
    %v99 = vunpack.c.l.b16 %v57
    %v100 = vunpack.c.l.b16 %v58
    %v101 = vunpack.c.l.b16 %v59
    %v102 = vunpack.c.l.b16 %v60
    %v103 = vunpack.c.l.b16 %v61
    %v104 = vunpack.c.l.b16 %v62
    %v105 = vunpack.c.l.b16 %v63
    %v106 = vunpack.c.l.b16 %v64
    %v107 = vunpack.c.l.b16 %v65
    %v108 = vunpack.c.l.b16 %v66
    %v109 = vunpack.c.l.b16 %v67
    %v110 = vpack.c.b16 %v95, %v94
    %v111 = vpack.c.b16 %v97, %v96
    %v112 = vpack.c.b16 %v99, %v98
    %v113 = vpack.c.b16 %v101, %v100
    %v114 = vpack.c.b16 %v103, %v102
    %v115 = vpack.c.b16 %v105, %v104
    %v116 = vpack.c.b16 %v107, %v106
    %v117 = vpack.c.b16 %v109, %v108
    %126 = vmatprep.subr.bf16.mxu0 0
    %127 = vmatpush1.bf16.msra.mxu0 %v117
    %128 = vmatprep.subr.bf16.mxu0 0
    %129 = vmatpush1.bf16.msra.mxu0 %v116
    %130 = vmatprep.subr.bf16.mxu0 0
    %131 = vmatpush1.bf16.msra.mxu0 %v115
    %132 = vmatprep.subr.bf16.mxu0 0
    %133 = vmatpush1.bf16.msra.mxu0 %v114
    %134 = vmatprep.subr.bf16.mxu0 0
    %135 = vmatpush1.bf16.msra.mxu0 %v113
    %136 = vmatprep.subr.bf16.mxu0 0
    %137 = vmatpush1.bf16.msra.mxu0 %v112
    %138 = vmatprep.subr.bf16.mxu0 0
    %139 = vmatpush1.bf16.msra.mxu0 %v111
    %140 = vmatprep.subr.bf16.mxu0 0
    %141 = vmatpush1.bf16.msra.mxu0 %v110
    %142 = vmatprep.subr.bf16.mxu0 0
    %143 = vmatpush2.bf16.msra.mxu0 0
    %144 = vmatprep.subr.bf16.mxu0 0
    %145 = vmatpush2.bf16.msra.mxu0 0
    %146 = vmatprep.subr.bf16.mxu0 0
    %147 = vmatpush2.bf16.msra.mxu0 0
    %148 = vmatprep.subr.bf16.mxu0 0
    %149 = vmatpush2.bf16.msra.mxu0 0
    %150 = vmatprep.subr.bf16.mxu0 0
    %151 = vmatpush2.bf16.msra.mxu0 0
    %152 = vmatprep.subr.bf16.mxu0 0
    %153 = vmatpush2.bf16.msra.mxu0 0
    %154 = vmatprep.subr.bf16.mxu0 0
    %155 = vmatpush2.bf16.msra.mxu0 0
    %156 = vmatprep.subr.bf16.mxu0 0
    %157 = vmatpush2.bf16.msra.mxu0 0
    %158 = vmatprep.mubr.bf16.mxu0 0
    %159 = vmatmul.mubr.bf16.gmra.mxu0 %v76
    %v160 = vpop.f32.mrf.mxu0
    %v161 = vadd.f32 %v71, %v160
    %v162 = vpop.f32.mrf.mxu0
    %v163 = vpop.f32.mrf.mxu0
    %v164 = vadd.f32 %v71, %v163
    %v165 = vpop.f32.mrf.mxu0
    %166 = vdwg.mxu0
    %v167 = vtanh.pop %v161
    %v168 = vtanh.pop %v164
    %v169 = vpack.c.bf16 %v168, %v167
    %v171 = vunpack.c.l.b16 %v169
    %v172 = vunpack.c.h.b16 %v169
    %v173 = vpack.c.b16 %v171, %v171
    %v174 = vpack.c.b16 %v172, %v172
    %177 = vst [vmem:[#allocation7] sm:$0xf] %v173
    %178 = vst [vmem:[#allocation7 + $0x4] sm:$0xf] %v174
    // Predicated region
    $region22: #{tpu_custom_call.1} parent=1 // pred_check
      _
    $region23: #{tpu_custom_call.1} parent=1 // pred_check_branch
      %180 = sbr.rel (0) target = $region25
    $region24: #{tpu_custom_call.1} parent=1 // pred_region
      %s182 = ssub.s32 128, 128
      %183 = vsyncadd [#allocation4], %s182
      %s184 = sshll.u32 [#allocation7], 4
      %s185 = int_to_ptr.vmem [resolvable:$true] %s184
      %190 = dma.vmem_to_hbm [thread:$0]  %s185, 128, %s3, [#allocation4], 64, 64, 4
    $region25: #{tpu_custom_call.1} parent=1 // pred_fallthru
      _
    // Predicated region
    $region26: #{tpu_custom_call.1} parent=1 // pred_check
      _
    $region27: #{tpu_custom_call.1} parent=1 // pred_check_branch
      %192 = sbr.rel (0) target = $region29
    $region28: #{tpu_custom_call.1} parent=1 // pred_region
      %193 = dma.done [#allocation4], 128
    $region29: #{tpu_custom_call.1} parent=1 // pred_fallthru
      _
    %194 = vsyncpa [#allocation3], 1
    %195 = vsyncpa [#allocation6], 1
    %196 = vsyncpa [#allocation4], 1

</llo_original>
